<compile_context>
chip_gen: v7x
topology: tpu7x:2x2x1
jax: 0.10.0
libtpu: 0.0.40
codegen_flags: <defaults>
</compile_context>

<pallas_src>
import functools

import jax
import jax.numpy as jnp
from jax.experimental import pallas as pl
from jax.experimental.pallas import tpu as pltpu


def _preemph_kernel(x_ref, halo_ref, o_ref, *, preemph):
    j = pl.program_id(1)  # time-tile index

    x = x_ref[...].astype(jnp.float32)
    p = jnp.float32(preemph)

    # Shift-by-one along the time (lane) axis via the XLU rotate.
    # Column 0 holds the wrap-around value; it is fixed up below.
    x_prev = pltpu.roll(x, shift=1, axis=1)

    # Bulk result: full, lane-dense (unmasked) store of the whole tile.
    o_ref[...] = (x - p * x_prev).astype(o_ref.dtype)

    # Column 0 of this tile: the previous sample lives in the last column of
    # the previous time tile (the halo block).  For the very first tile the
    # previous sample is treated as 0 so that y[:, 0] == x[:, 0].
    prev_last = halo_ref[...][:, -1:].astype(jnp.float32)  # (bt, 1)
    prev_last = jnp.where(j == 0, jnp.zeros_like(prev_last), prev_last)
    o_ref[:, 0:1] = (x[:, 0:1] - p * prev_last).astype(o_ref.dtype)


def pre_emphasis_filter(x: jax.Array, preemph: float = 0.97, *,
                        time_tile: int = 8192, batch_tile: int = 64) -> jax.Array:
    """y[:, 0] = x[:, 0]; y[:, n] = x[:, n] - preemph * x[:, n-1].

    Args:
        x: array of shape (batch, time)
    """
    batch, time = x.shape

    # ---- time tiling (lanes): multiple of 128, or the full dim if not possible.
    if time % 128 == 0:
        tt = min(time, max(128, (time_tile // 128) * 128))
        halo_w = 128
    else:
        tt = time        # single full-extent block along time
        halo_w = time
    # ---- batch tiling (sublanes): multiple of 8, or the full dim if not possible.
    if batch % 8 == 0:
        bt = min(batch, max(8, (batch_tile // 8) * 8))
    else:
        bt = batch

    grid = (pl.cdiv(batch, bt), pl.cdiv(time, tt))
    halo_blocks_per_tile = tt // halo_w

    def x_map(i, j):
        return (i, j)

    def halo_map(i, j):
        # Last halo_w-wide column block of the previous time tile; clamped to
        # block 0 for j == 0 (that value is masked out inside the kernel).
        return (i, jnp.maximum(j * halo_blocks_per_tile - 1, 0))

    kernel = functools.partial(_preemph_kernel, preemph=preemph)
    return pl.pallas_call(
        kernel,
        out_shape=jax.ShapeDtypeStruct((batch, time), x.dtype),
        grid_spec=pltpu.PrefetchScalarGridSpec(
            num_scalar_prefetch=0,
            grid=grid,
            in_specs=[
                pl.BlockSpec((bt, tt), x_map),        # main tile
                pl.BlockSpec((bt, halo_w), halo_map),  # 1-tile halo (prev time tile)
            ],
            out_specs=pl.BlockSpec((bt, tt), x_map),
        ),
        compiler_params=pltpu.CompilerParams(
            dimension_semantics=("parallel", "parallel")),
    )(x, x)


def _reference(x: jax.Array, preemph: float = 0.97) -> jax.Array:
    return jnp.concatenate([x[:, :1], x[:, 1:] - preemph * x[:, :-1]], axis=1)


if __name__ == "__main__":
    key = jax.random.PRNGKey(0)
    preemph = 0.97

    # (batch, time, kwargs) — exercises: single tiny block, multi time-tile
    # (halo path), and both grid axes tiled.
    cases = [
        (2, 16, dict()),                                    # tiny, single block
        (4, 2048, dict(time_tile=512)),                     # 4 time tiles (halo)
        (16, 1024, dict(time_tile=256, batch_tile=8)),      # 2 x 4 grid
    ]

    for idx, (batch, time, kwargs) in enumerate(cases):
        key, sub = jax.random.split(key)
        x = jax.random.normal(sub, (batch, time), dtype=jnp.float32)

        y = pre_emphasis_filter(x, preemph, **kwargs)
        y = jax.block_until_ready(y)

        y_ref = _reference(x, preemph)
        assert y.shape == (batch, time)
        assert y.dtype == x.dtype
        assert jnp.allclose(y, y_ref, atol=1e-6, rtol=1e-6), f"mismatch in case {idx}"

    print("KERNEL_OK")
</pallas_src>

<mosaic_0001>
module attributes {stable_mosaic.version = 11 : i64} {
  func.func @_preemph_kernel(%arg0: i32, %arg1: i32, %arg2: memref<2x16xf32, #tpu.memory_space<vmem>>, %arg3: memref<2x16xf32, #tpu.memory_space<vmem>>, %arg4: memref<2x16xf32, #tpu.memory_space<vmem>>) attributes {dimension_semantics = [#tpu.dimension_semantics<parallel>, #tpu.dimension_semantics<parallel>], iteration_bounds = array<i64: 1, 1>, scalar_prefetch = 0 : i64, scratch_operands = 0 : i64, tpu.core_type = #tpu.core_type<tc>, window_params = [{transform_indices = @transform_0, window_bounds = array<i64: 2, 16>}, {transform_indices = @transform_1, window_bounds = array<i64: 2, 16>}, {transform_indices = @transform_2, window_bounds = array<i64: 2, 16>}]} {
    %c0 = arith.constant 0 : index
    %c0_0 = arith.constant 0 : index
    %0 = vector.load %arg2[%c0, %c0_0] : memref<2x16xf32, #tpu.memory_space<vmem>>, vector<2x16xf32>
    %c1_i32 = arith.constant 1 : i32
    %1 = tpu.dynamic_rotate %0 by %c1_i32 dim 1 : vector<2x16xf32>, i32 -> vector<2x16xf32>
    %cst = arith.constant 9.700000e-01 : f32
    %2 = vector.broadcast %cst : f32 to vector<2x16xf32>
    %3 = arith.mulf %2, %1 : vector<2x16xf32>
    %4 = arith.subf %0, %3 : vector<2x16xf32>
    %c0_1 = arith.constant 0 : index
    %c0_2 = arith.constant 0 : index
    %5 = vector.load %arg4[%c0_1, %c0_2] : memref<2x16xf32, #tpu.memory_space<vmem>>, vector<2x16xf32>
    tpu.vector_store %arg4[%c0_1, %c0_2], %4 {strides = array<i32>} : memref<2x16xf32, #tpu.memory_space<vmem>>, vector<2x16xf32>,
    %c0_3 = arith.constant 0 : index
    %c0_4 = arith.constant 0 : index
    %6 = vector.load %arg3[%c0_3, %c0_4] : memref<2x16xf32, #tpu.memory_space<vmem>>, vector<2x16xf32>
    %7 = vector.extract_strided_slice %6 {offsets = [0, 15], sizes = [2, 1], strides = [1, 1]} : vector<2x16xf32> to vector<2x1xf32>
    %c0_i32 = arith.constant 0 : i32
    %8 = arith.cmpi eq, %arg1, %c0_i32 : i32
    %cst_5 = arith.constant 0.000000e+00 : f32
    %9 = vector.broadcast %cst_5 : f32 to vector<2x1xf32>
    %10 = arith.select %8, %9, %7 : vector<2x1xf32>
    %11 = vector.extract_strided_slice %0 {offsets = [0, 0], sizes = [2, 1], strides = [1, 1]} : vector<2x16xf32> to vector<2x1xf32>
    %cst_6 = arith.constant 9.700000e-01 : f32
    %12 = vector.broadcast %cst_6 : f32 to vector<2x1xf32>
    %13 = arith.mulf %12, %10 : vector<2x1xf32>
    %14 = arith.subf %11, %13 : vector<2x1xf32>
    %c0_7 = arith.constant 0 : index
    %c0_8 = arith.constant 0 : index
    %15 = vector.load %arg4[%c0_7, %c0_8] : memref<2x16xf32, #tpu.memory_space<vmem>>, vector<2x1xf32>
    tpu.vector_store %arg4[%c0_7, %c0_8], %14 {strides = array<i32>} : memref<2x16xf32, #tpu.memory_space<vmem>>, vector<2x1xf32>,
    return
  }
  func.func @transform_0(%arg0: i32, %arg1: i32) -> (i32, i32) {
    %c0_i32 = arith.constant 0 : i32
    return %arg0, %arg1 : i32, i32
  }
  func.func @transform_1(%arg0: i32, %arg1: i32) -> (i32, i32) {
    %c1_i32 = arith.constant 1 : i32
    %0 = arith.muli %arg1, %c1_i32 : i32
    %c1_i32_0 = arith.constant 1 : i32
    %1 = arith.subi %0, %c1_i32_0 : i32
    %c0_i32 = arith.constant 0 : i32
    %2 = arith.maxsi %1, %c0_i32 : i32
    %c0_i32_1 = arith.constant 0 : i32
    return %arg0, %2 : i32, i32
  }
  func.func @transform_2(%arg0: i32, %arg1: i32) -> (i32, i32) {
    %c0_i32 = arith.constant 0 : i32
    return %arg0, %arg1 : i32, i32
  }
}

</mosaic_0001>

<llo_original>
// kernel: tpu_custom_call.1
$region0: #{tpu_custom_call.1}
  #allocation0 [shape = 'u32[]', space=smem, size = 0x4, offset = 0x4, fixed_abs, tag = 'smem constant byte address 0x4 - core index']
  #allocation1 [shape = 'u32[144,128]{1,0:T(1,128)}', space=vmem, size = 0x12000, scoped, tag = 'internal scratch']
  %s0 = inlined_call_operand.hbm [shape: f32[2,16], index: 0, kind: input, shape index: {}]
  %s1 = inlined_call_operand.vmem [shape: f32[2,16], index: 1, kind: input, shape index: {}]
  %s2 = inlined_call_operand.hbm [shape: f32[2,16], index: 2, kind: output, shape index: {}]
  %s3 = sld [smem:[#allocation0]]
  $region22: #{tpu_custom_call.1} parent=0
    _
  %s5 = ssub.s32 1, %s3
  %s6 = scalar_select 0, %s5, %s3
  $region1: #{tpu_custom_call.1} parent=0
    #allocation2 [shape = 'u8[1024]{0}', space=vmem, size = 0x400, scoped, tag = 'input window, operand 0, single buffered']
    #allocation3 [shape = 's32[1]{0}', space=sflag, size = 0x4, scoped, tag = 'scoped memory for tpu_custom_call.1']
    #allocation4 [shape = 's32[1]{0}', space=sflag, size = 0x4, scoped, tag = 'scoped memory for tpu_custom_call.1']
    #allocation5 [shape = 'u8[1024]{0}', space=vmem, size = 0x400, scoped, tag = 'output window, operand 0, single buffered']
    %7 = vsyncpa [#allocation3], 0
    %8 = vsyncpa [#allocation4], 0
    // Predicated region
    $region2: #{tpu_custom_call.1} parent=1 // pred_check
      _
    $region3: #{tpu_custom_call.1} parent=1 // pred_check_branch
      %10 = sbr.rel (0) target = $region5
    $region4: #{tpu_custom_call.1} parent=1 // pred_region
      %s12 = ssub.s32 32, 32
      %13 = vsyncadd [#allocation3], %s12
      %s15 = sshll.u32 [#allocation2], 4
      %s16 = int_to_ptr.vmem [resolvable:$true] %s15
      %18 = dma.hbm_to_vmem [thread:$0]  %s0, 32, %s16, [#allocation3]
    $region5: #{tpu_custom_call.1} parent=1 // pred_fallthru
      _
    // Predicated region
    $region6: #{tpu_custom_call.1} parent=1 // pred_check
      _
    $region7: #{tpu_custom_call.1} parent=1 // pred_check_branch
      %20 = sbr.rel (0) target = $region9
    $region8: #{tpu_custom_call.1} parent=1 // pred_region
      %s21 = ssub.s32 0, 1
      %p22 = scmp.gt.s32.totalorder %s21, 0
      %s23 = scalar_select %p22, %s21, 0
      %p24 = scmp.lt.s32.totalorder %s23, 0
      %s25 = scalar_select %p24, %s23, 0
      %s26 = smul.addr %s25, 2
      %s27 = scalar_lea.vmem %s1, %s26
      %s28 = ssub.s32 0, 1
      %p29 = scmp.gt.s32.totalorder %s28, 0
      %s30 = scalar_select %p29, %s28, 0
    $region9: #{tpu_custom_call.1} parent=1 // pred_fallthru
      _
    // Predicated region
    $region10: #{tpu_custom_call.1} parent=1 // pred_check
      _
    $region11: #{tpu_custom_call.1} parent=1 // pred_check_branch
      %32 = sbr.rel (0) target = $region13
    $region12: #{tpu_custom_call.1} parent=1 // pred_region
      %33 = dma.done [#allocation3], 32
    $region13: #{tpu_custom_call.1} parent=1 // pred_fallthru
      _
    %s34 = ssub.s32 0, 1
    %p35 = scmp.gt.s32.totalorder %s34, 0
    %s36 = scalar_select %p35, %s34, 0
    %p37 = scmp.lt.s32.totalorder %s36, 0
    %s38 = scalar_select %p37, %s36, 0
    %s39 = smul.addr %s38, 2
    %s40 = scalar_lea.vmem %s1, %s39
    %s41 = ssub.s32 0, 1
    %p42 = scmp.gt.s32.totalorder %s41, 0
    %s43 = scalar_select %p42, %s41, 0
    %p44 = scmp.lt.s32.totalorder %s43, 0
    %s45 = scalar_select %p44, %s43, 0
    %s46 = smul.addr %s45, 2
    %s47 = scalar_lea.vmem %s1, %s46
    %s48 = ssub.s32 0, 1
    %p49 = scmp.gt.s32.totalorder %s48, 0
    %s50 = scalar_select %p49, %s48, 0
    %v51 = vld [vmem:[#allocation2] sm:$0x3]
    %vm52 = vcmask 1047680
    %53 = vrot.lane.b32.xlu0 %v51, 16
    %v54 = vpop.permute.xlu0 %53
    %v55 = vsel %vm52, %v54, %v51
    %56 = vrot.lane.b32.xlu0 %v55, 16
    %v57 = vpop.permute.xlu0 %56
    %v58 = vsel %vm52, %v57, %v51
    %v59 = vmul.f32 %v58, 0.97
    %61 = vrot.lane.b32.xlu0 %v59, 113
    %v62 = vpop.permute.xlu0 %61
    %v64 = vsub.f32 %v51, %v62
    %vm65 = vcmask 123904
    %66 = vst.msk [vmem:[#allocation5] sm:$0x3] %vm65, %v64
    %v67 = vld [vmem:[%s47] sm:$0x3]
    %p68 = scmp.eq.s32.totalorder 0, 0
    %s69 = scalar_select %p68, 1, 0
    %v70 = vstv %s69
    %vm71 = vcmp.eq.s32.totalorder %v70, 1
    %v72 = vsel %vm71, 0.0, %v67
    %v73 = vmul.f32 %v72, 0.97
    %75 = vrot.lane.b32.xlu0 %v73, 113
    %v76 = vpop.permute.xlu0 %75
    %v78 = vsub.f32 %v51, %v76
    %vm79 = vcmask 1024
    %80 = vst.msk [vmem:[#allocation5] sm:$0x3] %vm79, %v78
    // Predicated region
    $region14: #{tpu_custom_call.1} parent=1 // pred_check
      _
    $region15: #{tpu_custom_call.1} parent=1 // pred_check_branch
      %82 = sbr.rel (0) target = $region17
    $region16: #{tpu_custom_call.1} parent=1 // pred_region
      %s84 = ssub.s32 32, 32
      %85 = vsyncadd [#allocation4], %s84
      %s87 = sshll.u32 [#allocation5], 4
      %s88 = int_to_ptr.vmem [resolvable:$true] %s87
      %90 = dma.vmem_to_hbm [thread:$0]  %s88, 32, %s2, [#allocation4]
    $region17: #{tpu_custom_call.1} parent=1 // pred_fallthru
      _
    // Predicated region
    $region18: #{tpu_custom_call.1} parent=1 // pred_check
      _
    $region19: #{tpu_custom_call.1} parent=1 // pred_check_branch
      %92 = sbr.rel (0) target = $region21
    $region20: #{tpu_custom_call.1} parent=1 // pred_region
      %93 = dma.done [#allocation4], 32
    $region21: #{tpu_custom_call.1} parent=1 // pred_fallthru
      _
    %94 = vsyncpa [#allocation3], 1
    %95 = vsyncpa [#allocation4], 1

</llo_original>
